<compile_context>
chip_gen: v7x
topology: tpu7x:2x2x1
jax: 0.10.0
libtpu: 0.0.40
codegen_flags: <defaults>
</compile_context>

<pallas_src>
import jax
import jax.numpy as jnp
from jax.experimental import pallas as pl
from jax.experimental.pallas import tpu as pltpu

_LANE = 128
_SUBLANE = 8


def _round_up(x, m):
    return (x + m - 1) // m * m


def _cdiv(a, b):
    return -(-a // b)


def _pack_factor(hidden):
    """Per-group padded hidden width and number of groups packed per 128 lanes."""
    if hidden >= _LANE:
        return _round_up(hidden, _LANE), 1
    hd = 1
    while hd < hidden:
        hd *= 2
    return hd, _LANE // hd


def _mlp_kernel(x_ref, w1_ref, b1_ref, w2_ref, b2_ref, w3_ref, b3_ref,
                wq_ref, bq_ref, o_ref):
    """One batch tile of the packed 4-layer MLP.

    Each sublane row of x_ref holds G packed batch rows; all weights are
    block-diagonal kron(I_G, W) so groups never mix.  Matmul inputs are in
    compute dtype (bf16 by default), accumulation / bias / ReLU are f32.
    """
    h = jnp.dot(x_ref[...], w1_ref[...], preferred_element_type=jnp.float32)
    h = jnp.maximum(h + b1_ref[...], 0.0)

    w2 = w2_ref[...]
    h = jnp.maximum(
        jnp.dot(h.astype(w2.dtype), w2,
                preferred_element_type=jnp.float32) + b2_ref[...], 0.0)

    w3 = w3_ref[...]
    h = jnp.maximum(
        jnp.dot(h.astype(w3.dtype), w3,
                preferred_element_type=jnp.float32) + b3_ref[...], 0.0)

    # Final hidden->1 layer fused with the per-group reduction: one matmul
    # against kron(I_G, wq) yields a (tile_rows, G) lane-dense result.
    wq = wq_ref[...]
    q = jnp.dot(h.astype(wq.dtype), wq, preferred_element_type=jnp.float32)
    o_ref[...] = (q + bq_ref[0, 0]).astype(o_ref.dtype)


def prepare_params(params, compute_dtype=jnp.bfloat16):
    """Pad hidden to a 128-divisor and build block-diagonal packed weights.

    For hidden < 128, G = 128 // hidden_pad batch rows share one 128-lane
    register; weights become kron(I_G, W) and biases are tiled G times.
    Zero-padded hidden lanes have zero weight/bias, stay 0 through ReLU and
    contribute nothing to q, so results are mathematically unchanged.
    Call ONCE outside the training/eval loop.

    compute_dtype=bfloat16 (default) feeds the MXU at its native rate while
    accumulation/bias/ReLU stay f32 in-kernel; pass float32 for tight parity
    with an f32 reference.
    """
    w1, b1 = params["w1"], params["b1"]
    w2, b2 = params["w2"], params["b2"]
    w3, b3 = params["w3"], params["b3"]
    wq, bq = params["wq"], params["bq"]
    in_total, hidden = w1.shape
    hd, G = _pack_factor(hidden)
    ph = hd - hidden

    pad_c = lambda a: jnp.pad(a, ((0, 0), (0, ph)))            # pad out-features
    blockdiag = lambda a: jnp.kron(jnp.eye(G, dtype=a.dtype), a)
    tile_g = lambda a: jnp.tile(a, (1, G))

    w1p = pad_c(w1)                                            # (in, hd)
    w2p = jnp.pad(w2, ((0, ph), (0, ph)))                      # (hd, hd)
    w3p = jnp.pad(w3, ((0, ph), (0, ph)))
    wqp = jnp.pad(wq, ((0, ph), (0, 0)))                       # (hd, 1)

    return dict(
        w1=blockdiag(w1p).astype(compute_dtype),               # (G*in, G*hd)
        b1=tile_g(pad_c(b1)).astype(jnp.float32),              # (1, G*hd)
        w2=blockdiag(w2p).astype(compute_dtype),                # (G*hd, G*hd)
        b2=tile_g(pad_c(b2)).astype(jnp.float32),
        w3=blockdiag(w3p).astype(compute_dtype),
        b3=tile_g(pad_c(b3)).astype(jnp.float32),
        wq=blockdiag(wqp).astype(compute_dtype),                # (G*hd, G)
        bq=jnp.asarray(bq, jnp.float32).reshape(1, 1),          # SMEM scalar
        group=G, in_total=in_total, hidden=hidden,
    )


def flatten_mlp_forward(obs, prepared, action=None, *, tile_rows=None):
    """Pallas forward pass of flatten_mlp.

    obs:      (B, obs_dims) array
    action:   optional (B, action_dims) array
    prepared: output of prepare_params(...)
    returns   (B, 1) float32
    """
    G = int(prepared["group"])
    in_total = int(prepared["in_total"])
    hidden = int(prepared["hidden"])
    compute_dtype = prepared["w1"].dtype
    itemsize = jnp.dtype(compute_dtype).itemsize

    x = obs if action is None else jnp.concatenate([obs, action], axis=1)
    B, feat = x.shape
    if feat != in_total:
        raise ValueError(f"input has {feat} features, params expect {in_total}")
    x = x.astype(compute_dtype)

    # ---- batch packing + tile sizing ---------------------------------------
    rows = _cdiv(B, G)                       # packed rows (G batch rows each)
    if tile_rows is None:
        # Big tiles amortize the ~0.35us/step overhead (cheap in VMEM), but
        # force >=4 grid steps when there is enough work so the "parallel"
        # batch axis can be sharded over both v7x TensorCores.
        tile_rows = _round_up(rows, _SUBLANE)
        if rows >= 4 * _SUBLANE:
            tile_rows = _round_up(_cdiv(rows, 4), _SUBLANE)
        tile_rows = min(tile_rows, 2048)
    tile_rows = max(_SUBLANE, _round_up(int(tile_rows), _SUBLANE))

    rp = _round_up(rows, tile_rows)          # padded packed-row count
    bp = rp * G                              # padded batch
    if bp != B:
        x = jnp.pad(x, ((0, bp - B), (0, 0)))
    x = x.reshape(rp, G * in_total)          # pack G batch rows per 128 lanes
    grid = (rp // tile_rows,)

    kin = G * in_total
    hp = prepared["w2"].shape[0]             # G * padded hidden (>=128)

    def const_spec(arr):                     # VMEM-resident weight/bias
        return pl.BlockSpec(arr.shape, lambda i: (0, 0))

    weight_keys = ("w1", "b1", "w2", "b2", "w3", "b3", "wq")
    weights = [prepared[k] for k in weight_keys]
    in_specs = ([pl.BlockSpec((tile_rows, kin), lambda i: (i, 0))]
                + [const_spec(a) for a in weights]
                + [pl.BlockSpec(memory_space=pltpu.MemorySpace.SMEM)])  # bq
    out_specs = pl.BlockSpec((tile_rows, G), lambda i: (i, 0))

    # VMEM budget: double-buffered x/out tiles + resident weights + f32
    # intermediates + headroom; clamp to 40 MiB so it always fits v7x's
    # 64 MiB physical VMEM (v5e/v6e's 128 MiB trivially fit the same tiles).
    weight_bytes = sum(int(a.size) * a.dtype.itemsize for a in weights)
    vmem_limit = (2 * tile_rows * kin * itemsize          # input tiles
                  + 2 * tile_rows * G * 4                 # output tiles
                  + 2 * weight_bytes                      # resident weights
                  + 8 * tile_rows * hp * 4                # activations/temps
                  + (4 << 20))                            # headroom
    vmem_limit = int(min(max(vmem_limit, 16 << 20), 40 << 20))

    cost = pl.CostEstimate(
        flops=2 * bp * (in_total * hidden + 2 * hidden * hidden + hidden),
        transcendentals=0,
        bytes_accessed=int(bp * in_total * itemsize + bp * 4 + weight_bytes),
    )

    out = pl.pallas_call(
        _mlp_kernel,
        out_shape=jax.ShapeDtypeStruct((rp, G), jnp.float32),
        grid=grid,
        in_specs=in_specs,
        out_specs=out_specs,
        compiler_params=pltpu.CompilerParams(
            dimension_semantics=("parallel",),   # batch tiles over both TCs (v7x)
            vmem_limit_bytes=vmem_limit),
        cost_estimate=cost,
    )(x, *weights, prepared["bq"])
    return out.reshape(bp, 1)[:B]


def init_params(key, in_dims, hidden):
    """nn.Linear-style init; weights stored (in_features, out_features)."""
    def linear(k, fan_in, fan_out):
        kw, kb = jax.random.split(k)
        bound = 1.0 / jnp.sqrt(fan_in)
        w = jax.random.uniform(kw, (fan_in, fan_out), jnp.float32, -bound, bound)
        b = jax.random.uniform(kb, (1, fan_out), jnp.float32, -bound, bound)
        return w, b

    k1, k2, k3, k4 = jax.random.split(key, 4)
    w1, b1 = linear(k1, in_dims, hidden)
    w2, b2 = linear(k2, hidden, hidden)
    w3, b3 = linear(k3, hidden, hidden)
    wq, bq = linear(k4, hidden, 1)
    return dict(w1=w1, b1=b1, w2=w2, b2=b2, w3=w3, b3=b3, wq=wq, bq=bq)


def _reference(obs, params, action=None):
    x = obs if action is None else jnp.concatenate([obs, action], axis=1)
    h = jax.nn.relu(x @ params["w1"] + params["b1"])
    h = jax.nn.relu(h @ params["w2"] + params["b2"])
    h = jax.nn.relu(h @ params["w3"] + params["b3"])
    return h @ params["wq"] + params["bq"]


if __name__ == "__main__":
    key = jax.random.PRNGKey(0)
    batch, input_dims, action_dims, hidden = 70, 16, 4, 32

    k_obs, k_act, k_par, k_par2 = jax.random.split(key, 4)
    obs = jax.random.normal(k_obs, (batch, input_dims), jnp.float32)
    action = jax.random.normal(k_act, (batch, action_dims), jnp.float32)
    params = init_params(k_par, input_dims + action_dims, hidden)
    ref = _reference(obs, params, action)

    # f32 parity path (single grid step).
    prep_f32 = prepare_params(params, compute_dtype=jnp.float32)
    out_f32 = jax.block_until_ready(flatten_mlp_forward(obs, prep_f32, action))
    assert out_f32.shape == (batch, 1)
    assert jnp.allclose(out_f32, ref, atol=1e-4, rtol=1e-4)

    # Default bf16 fast path (f32 accumulation); small tile forces a
    # multi-step grid to exercise the parallel batch axis.
    prep_bf16 = prepare_params(params)
    out_bf16 = jax.block_until_ready(
        flatten_mlp_forward(obs, prep_bf16, action, tile_rows=8))
    assert out_bf16.shape == (batch, 1)
    assert jnp.allclose(out_bf16, ref, atol=5e-2, rtol=5e-2)

    # Value-network variant without an action input.
    params_v = init_params(k_par2, input_dims, hidden)
    prep_v = prepare_params(params_v, compute_dtype=jnp.float32)
    out_v = jax.block_until_ready(flatten_mlp_forward(obs, prep_v))
    assert jnp.allclose(out_v, _reference(obs, params_v), atol=1e-4, rtol=1e-4)

    print("KERNEL_OK")
</pallas_src>

<mosaic_0001>
module attributes {stable_mosaic.version = 11 : i64} {
  func.func @_mlp_kernel(%arg0: i32, %arg1: memref<24x80xf32, #tpu.memory_space<vmem>>, %arg2: memref<80x128xf32, #tpu.memory_space<vmem>>, %arg3: memref<1x128xf32, #tpu.memory_space<vmem>>, %arg4: memref<128x128xf32, #tpu.memory_space<vmem>>, %arg5: memref<1x128xf32, #tpu.memory_space<vmem>>, %arg6: memref<128x128xf32, #tpu.memory_space<vmem>>, %arg7: memref<1x128xf32, #tpu.memory_space<vmem>>, %arg8: memref<128x4xf32, #tpu.memory_space<vmem>>, %arg9: memref<1x1xf32, #tpu.memory_space<smem>>, %arg10: memref<24x4xf32, #tpu.memory_space<vmem>>) attributes {dimension_semantics = [#tpu.dimension_semantics<parallel>], iteration_bounds = array<i64: 1>, scalar_prefetch = 0 : i64, scratch_operands = 0 : i64, tpu.core_type = #tpu.core_type<tc>, window_params = [{transform_indices = @transform_0, window_bounds = array<i64: 24, 80>}, {pipeline_mode = #tpu.pipeline_mode<synchronous>, transform_indices = @transform_1, window_bounds = array<i64: 80, 128>}, {pipeline_mode = #tpu.pipeline_mode<synchronous>, transform_indices = @transform_2, window_bounds = array<i64: 1, 128>}, {pipeline_mode = #tpu.pipeline_mode<synchronous>, transform_indices = @transform_3, window_bounds = array<i64: 128, 128>}, {pipeline_mode = #tpu.pipeline_mode<synchronous>, transform_indices = @transform_4, window_bounds = array<i64: 1, 128>}, {pipeline_mode = #tpu.pipeline_mode<synchronous>, transform_indices = @transform_5, window_bounds = array<i64: 128, 128>}, {pipeline_mode = #tpu.pipeline_mode<synchronous>, transform_indices = @transform_6, window_bounds = array<i64: 1, 128>}, {pipeline_mode = #tpu.pipeline_mode<synchronous>, transform_indices = @transform_7, window_bounds = array<i64: 128, 4>}, {transform_indices = @transform_8, window_bounds = array<i64: 1, 1>}, {transform_indices = @transform_9, window_bounds = array<i64: 24, 4>}]} {
    %c0 = arith.constant 0 : index
    %c0_0 = arith.constant 0 : index
    %0 = vector.load %arg1[%c0, %c0_0] : memref<24x80xf32, #tpu.memory_space<vmem>>, vector<24x80xf32>
    %c0_1 = arith.constant 0 : index
    %c0_2 = arith.constant 0 : index
    %1 = vector.load %arg2[%c0_1, %c0_2] : memref<80x128xf32, #tpu.memory_space<vmem>>, vector<80x128xf32>
    %cst = arith.constant dense<0.000000e+00> : vector<24x128xf32>
    %2 = tpu.matmul %0, %1, %cst {dimension_numbers = #tpu.dot_dimension_numbers<[1], [0], [0], [1], [0, 0, 1, 1], [], []>} : vector<24x80xf32>, vector<80x128xf32>, vector<24x128xf32> -> vector<24x128xf32>
    %c0_3 = arith.constant 0 : index
    %c0_4 = arith.constant 0 : index
    %3 = vector.load %arg3[%c0_3, %c0_4] : memref<1x128xf32, #tpu.memory_space<vmem>>, vector<1x128xf32>
    %4 = vector.broadcast %3 : vector<1x128xf32> to vector<24x128xf32>
    %5 = arith.addf %2, %4 : vector<24x128xf32>
    %cst_5 = arith.constant 0.000000e+00 : f32
    %6 = vector.broadcast %cst_5 : f32 to vector<24x128xf32>
    %7 = arith.maximumf %5, %6 : vector<24x128xf32>
    %c0_6 = arith.constant 0 : index
    %c0_7 = arith.constant 0 : index
    %8 = vector.load %arg4[%c0_6, %c0_7] : memref<128x128xf32, #tpu.memory_space<vmem>>, vector<128x128xf32>
    %cst_8 = arith.constant dense<0.000000e+00> : vector<24x128xf32>
    %9 = tpu.matmul %7, %8, %cst_8 {dimension_numbers = #tpu.dot_dimension_numbers<[1], [0], [0], [1], [0, 0, 1, 1], [], []>} : vector<24x128xf32>, vector<128x128xf32>, vector<24x128xf32> -> vector<24x128xf32>
    %c0_9 = arith.constant 0 : index
    %c0_10 = arith.constant 0 : index
    %10 = vector.load %arg5[%c0_9, %c0_10] : memref<1x128xf32, #tpu.memory_space<vmem>>, vector<1x128xf32>
    %11 = vector.broadcast %10 : vector<1x128xf32> to vector<24x128xf32>
    %12 = arith.addf %9, %11 : vector<24x128xf32>
    %cst_11 = arith.constant 0.000000e+00 : f32
    %13 = vector.broadcast %cst_11 : f32 to vector<24x128xf32>
    %14 = arith.maximumf %12, %13 : vector<24x128xf32>
    %c0_12 = arith.constant 0 : index
    %c0_13 = arith.constant 0 : index
    %15 = vector.load %arg6[%c0_12, %c0_13] : memref<128x128xf32, #tpu.memory_space<vmem>>, vector<128x128xf32>
    %cst_14 = arith.constant dense<0.000000e+00> : vector<24x128xf32>
    %16 = tpu.matmul %14, %15, %cst_14 {dimension_numbers = #tpu.dot_dimension_numbers<[1], [0], [0], [1], [0, 0, 1, 1], [], []>} : vector<24x128xf32>, vector<128x128xf32>, vector<24x128xf32> -> vector<24x128xf32>
    %c0_15 = arith.constant 0 : index
    %c0_16 = arith.constant 0 : index
    %17 = vector.load %arg7[%c0_15, %c0_16] : memref<1x128xf32, #tpu.memory_space<vmem>>, vector<1x128xf32>
    %18 = vector.broadcast %17 : vector<1x128xf32> to vector<24x128xf32>
    %19 = arith.addf %16, %18 : vector<24x128xf32>
    %cst_17 = arith.constant 0.000000e+00 : f32
    %20 = vector.broadcast %cst_17 : f32 to vector<24x128xf32>
    %21 = arith.maximumf %19, %20 : vector<24x128xf32>
    %c0_18 = arith.constant 0 : index
    %c0_19 = arith.constant 0 : index
    %22 = vector.load %arg8[%c0_18, %c0_19] : memref<128x4xf32, #tpu.memory_space<vmem>>, vector<128x4xf32>
    %cst_20 = arith.constant dense<0.000000e+00> : vector<24x4xf32>
    %23 = tpu.matmul %21, %22, %cst_20 {dimension_numbers = #tpu.dot_dimension_numbers<[1], [0], [0], [1], [0, 0, 1, 1], [], []>} : vector<24x128xf32>, vector<128x4xf32>, vector<24x4xf32> -> vector<24x4xf32>
    %c0_21 = arith.constant 0 : index
    %c0_22 = arith.constant 0 : index
    %24 = memref.load %arg9[%c0_21, %c0_22] : memref<1x1xf32, #tpu.memory_space<smem>>
    %25 = vector.broadcast %24 : f32 to vector<24x4xf32>
    %26 = arith.addf %23, %25 : vector<24x4xf32>
    %c0_23 = arith.constant 0 : index
    %c0_24 = arith.constant 0 : index
    %27 = vector.load %arg10[%c0_23, %c0_24] : memref<24x4xf32, #tpu.memory_space<vmem>>, vector<24x4xf32>
    tpu.vector_store %arg10[%c0_23, %c0_24], %26 {strides = array<i32>} : memref<24x4xf32, #tpu.memory_space<vmem>>, vector<24x4xf32>,
    return
  }
  func.func @transform_0(%arg0: i32) -> (i32, i32) {
    %c0_i32 = arith.constant 0 : i32
    %c0_i32_0 = arith.constant 0 : i32
    return %arg0, %c0_i32 : i32, i32
  }
  func.func @transform_1(%arg0: i32) -> (i32, i32) {
    %c0_i32 = arith.constant 0 : i32
    %c0_i32_0 = arith.constant 0 : i32
    %c0_i32_1 = arith.constant 0 : i32
    return %c0_i32, %c0_i32_0 : i32, i32
  }
  func.func @transform_2(%arg0: i32) -> (i32, i32) {
    %c0_i32 = arith.constant 0 : i32
    %c0_i32_0 = arith.constant 0 : i32
    %c0_i32_1 = arith.constant 0 : i32
    return %c0_i32, %c0_i32_0 : i32, i32
  }
  func.func @transform_3(%arg0: i32) -> (i32, i32) {
    %c0_i32 = arith.constant 0 : i32
    %c0_i32_0 = arith.constant 0 : i32
    %c0_i32_1 = arith.constant 0 : i32
    return %c0_i32, %c0_i32_0 : i32, i32
  }
  func.func @transform_4(%arg0: i32) -> (i32, i32) {
    %c0_i32 = arith.constant 0 : i32
    %c0_i32_0 = arith.constant 0 : i32
    %c0_i32_1 = arith.constant 0 : i32
    return %c0_i32, %c0_i32_0 : i32, i32
  }
  func.func @transform_5(%arg0: i32) -> (i32, i32) {
    %c0_i32 = arith.constant 0 : i32
    %c0_i32_0 = arith.constant 0 : i32
    %c0_i32_1 = arith.constant 0 : i32
    return %c0_i32, %c0_i32_0 : i32, i32
  }
  func.func @transform_6(%arg0: i32) -> (i32, i32) {
    %c0_i32 = arith.constant 0 : i32
    %c0_i32_0 = arith.constant 0 : i32
    %c0_i32_1 = arith.constant 0 : i32
    return %c0_i32, %c0_i32_0 : i32, i32
  }
  func.func @transform_7(%arg0: i32) -> (i32, i32) {
    %c0_i32 = arith.constant 0 : i32
    %c0_i32_0 = arith.constant 0 : i32
    %c0_i32_1 = arith.constant 0 : i32
    return %c0_i32, %c0_i32_0 : i32, i32
  }
  func.func @transform_8(%arg0: i32) -> (i32, i32) {
    %c0_i32 = arith.constant 0 : i32
    %c0_i32_0 = arith.constant 0 : i32
    %c0_i32_1 = arith.constant 0 : i32
    return %c0_i32, %c0_i32_0 : i32, i32
  }
  func.func @transform_9(%arg0: i32) -> (i32, i32) {
    %c0_i32 = arith.constant 0 : i32
    %c0_i32_0 = arith.constant 0 : i32
    return %arg0, %c0_i32 : i32, i32
  }
}

</mosaic_0001>

<llo_original>
// kernel: tpu_custom_call.1
$region0: #{tpu_custom_call.1}
  #allocation0 [shape = 'u32[]', space=smem, size = 0x4, offset = 0x4, fixed_abs, tag = 'smem constant byte address 0x4 - core index']
  #allocation1 [shape = 'u32[144,128]{1,0:T(1,128)}', space=vmem, size = 0x12000, scoped, tag = 'internal scratch']
  #allocation2 [shape = 'f32[1,1]{1,0:T(1,128)S(6)}', space=smem, size = 0x200, scoped, tag = 'scoped memory for tpu_custom_call.1']
  %s0 = inlined_call_operand.hbm [shape: f32[24,80], index: 0, kind: input, shape index: {}]
  %s1 = inlined_call_operand.hbm [shape: f32[80,128], index: 1, kind: input, shape index: {}]
  %s2 = inlined_call_operand.vmem [shape: f32[1,128], index: 2, kind: input, shape index: {}]
  %s3 = inlined_call_operand.vmem [shape: f32[128,128], index: 3, kind: input, shape index: {}]
  %s4 = inlined_call_operand.vmem [shape: f32[1,128], index: 4, kind: input, shape index: {}]
  %s5 = inlined_call_operand.hbm [shape: f32[128,128], index: 5, kind: input, shape index: {}]
  %s6 = inlined_call_operand.vmem [shape: f32[1,128], index: 6, kind: input, shape index: {}]
  %s7 = inlined_call_operand.vmem [shape: f32[128,4], index: 7, kind: input, shape index: {}]
  %s8 = inlined_call_operand.<no memory space> [shape: f32[1,1], index: 8, kind: input, shape index: {}]
  %s9 = inlined_call_operand.vmem [shape: f32[24,4], index: 9, kind: output, shape index: {}]
  %s10 = sld [smem:[#allocation0]]
  $region58: #{tpu_custom_call.1} parent=0
    _
  %s12 = ssub.s32 1, %s10
  %s13 = scalar_select 0, %s12, %s10
  %14 = sst [smem:[#allocation2]] %s8
  $region1: #{tpu_custom_call.1} parent=0
    #allocation3 [shape = 'u8[12288]{0}', space=vmem, size = 0x3000, scoped, tag = 'input window, operand 0, single buffered']
    #allocation4 [shape = 's32[1]{0}', space=sflag, size = 0x4, scoped, tag = 'scoped memory for tpu_custom_call.1']
    #allocation5 [shape = 'u8[40960]{0}', space=vmem, size = 0xa000, scoped, tag = 'input window, operand 1, single buffered']
    #allocation6 [shape = 's32[1]{0}', space=sflag, size = 0x4, scoped, tag = 'scoped memory for tpu_custom_call.1']
    #allocation7 [shape = 'u8[65536]{0}', space=vmem, size = 0x10000, scoped, tag = 'input window, operand 5, single buffered']
    %15 = vsyncpa [#allocation4], 0
    %16 = vsyncpa [#allocation6], 0
    // Predicated region
    $region2: #{tpu_custom_call.1} parent=1 // pred_check
      _
    $region3: #{tpu_custom_call.1} parent=1 // pred_check_branch
      %18 = sbr.rel (0) target = $region5
    $region4: #{tpu_custom_call.1} parent=1 // pred_region
      %s20 = ssub.s32 384, 384
      %21 = vsyncadd [#allocation4], %s20
      %s22 = sshll.u32 [#allocation3], 4
      %s23 = int_to_ptr.vmem [resolvable:$true] %s22
      %28 = dma.hbm_to_vmem [thread:$0]  %s0, 384, %s23, [#allocation4], 128, 128, 8
    $region5: #{tpu_custom_call.1} parent=1 // pred_fallthru
      _
    // Predicated region
    $region6: #{tpu_custom_call.1} parent=1 // pred_check
      _
    $region7: #{tpu_custom_call.1} parent=1 // pred_check_branch
      %30 = sbr.rel (0) target = $region9
    $region8: #{tpu_custom_call.1} parent=1 // pred_region
      %s32 = ssub.s32 1280, 1280
      %33 = vsyncadd [#allocation6], %s32
      %s34 = sshll.u32 [#allocation5], 4
      %s35 = int_to_ptr.vmem [resolvable:$true] %s34
      %40 = dma.hbm_to_vmem [thread:$0]  %s1, 1280, %s35, [#allocation6], 128, 128, 8
    $region9: #{tpu_custom_call.1} parent=1 // pred_fallthru
      _
    // Predicated region
    $region10: #{tpu_custom_call.1} parent=1 // pred_check
      _
    $region11: #{tpu_custom_call.1} parent=1 // pred_check_branch
      %42 = sbr.rel (0) target = $region13
    $region12: #{tpu_custom_call.1} parent=1 // pred_region
      _
    $region13: #{tpu_custom_call.1} parent=1 // pred_fallthru
      _
    // Predicated region
    $region14: #{tpu_custom_call.1} parent=1 // pred_check
      _
    $region15: #{tpu_custom_call.1} parent=1 // pred_check_branch
      %44 = sbr.rel (0) target = $region17
    $region16: #{tpu_custom_call.1} parent=1 // pred_region
      _
    $region17: #{tpu_custom_call.1} parent=1 // pred_fallthru
      _
    // Predicated region
    $region18: #{tpu_custom_call.1} parent=1 // pred_check
      _
    $region19: #{tpu_custom_call.1} parent=1 // pred_check_branch
      %46 = sbr.rel (0) target = $region21
    $region20: #{tpu_custom_call.1} parent=1 // pred_region
      _
    $region21: #{tpu_custom_call.1} parent=1 // pred_fallthru
      _
    // Predicated region
    $region22: #{tpu_custom_call.1} parent=1 // pred_check
      _
    $region23: #{tpu_custom_call.1} parent=1 // pred_check_branch
      %48 = sbr.rel (0) target = $region25
    $region24: #{tpu_custom_call.1} parent=1 // pred_region
      %s50 = ssub.s32 2048, 2048
      %51 = vsyncadd [#allocation6], %s50
      %s52 = sshll.u32 [#allocation7], 4
      %s53 = int_to_ptr.vmem [resolvable:$true] %s52
      %58 = dma.hbm_to_vmem [thread:$0]  %s5, 2048, %s53, [#allocation6], 128, 128, 8
    $region25: #{tpu_custom_call.1} parent=1 // pred_fallthru
      _
    // Predicated region
    $region26: #{tpu_custom_call.1} parent=1 // pred_check
      _
    $region27: #{tpu_custom_call.1} parent=1 // pred_check_branch
      %60 = sbr.rel (0) target = $region29
    $region28: #{tpu_custom_call.1} parent=1 // pred_region
      _
    $region29: #{tpu_custom_call.1} parent=1 // pred_fallthru
      _
    // Predicated region
    $region30: #{tpu_custom_call.1} parent=1 // pred_check
      _
    $region31: #{tpu_custom_call.1} parent=1 // pred_check_branch
      %62 = sbr.rel (0) target = $region33
    $region32: #{tpu_custom_call.1} parent=1 // pred_region
      _
    $region33: #{tpu_custom_call.1} parent=1 // pred_fallthru
      _
    // Predicated region
    $region34: #{tpu_custom_call.1} parent=1 // pred_check
      _
    $region35: #{tpu_custom_call.1} parent=1 // pred_check_branch
      %64 = sbr.rel (0) target = $region37
    $region36: #{tpu_custom_call.1} parent=1 // pred_region
      _
    $region37: #{tpu_custom_call.1} parent=1 // pred_fallthru
      _
    // Predicated region
    $region38: #{tpu_custom_call.1} parent=1 // pred_check
      _
    $region39: #{tpu_custom_call.1} parent=1 // pred_check_branch
      %66 = sbr.rel (0) target = $region41
    $region40: #{tpu_custom_call.1} parent=1 // pred_region
      %67 = dma.done [#allocation4], 384
    $region41: #{tpu_custom_call.1} parent=1 // pred_fallthru
      _
    // Predicated region
    $region42: #{tpu_custom_call.1} parent=1 // pred_check
      _
    $region43: #{tpu_custom_call.1} parent=1 // pred_check_branch
      %69 = sbr.rel (0) target = $region45
    $region44: #{tpu_custom_call.1} parent=1 // pred_region
      %70 = dma.done [#allocation6], 1280
    $region45: #{tpu_custom_call.1} parent=1 // pred_fallthru
      _
    // Predicated region
    $region46: #{tpu_custom_call.1} parent=1 // pred_check
      _
    $region47: #{tpu_custom_call.1} parent=1 // pred_check_branch
      %72 = sbr.rel (0) target = $region49
    $region48: #{tpu_custom_call.1} parent=1 // pred_region
      %73 = dma.done [#allocation6], 2048
    $region49: #{tpu_custom_call.1} parent=1 // pred_fallthru
      _
    %v74 = vld [vmem:[#allocation3] sm:$0xff]
    %v75 = vld [vmem:[#allocation3 + $0x8] sm:$0xff]
    %v76 = vld [vmem:[#allocation3 + $0x10] sm:$0xff]
    %v77 = vld [vmem:[#allocation5] sm:$0xff]
    %v78 = vld [vmem:[#allocation5 + $0x8] sm:$0xff]
    %v79 = vld [vmem:[#allocation5 + $0x10] sm:$0xff]
    %v80 = vld [vmem:[#allocation5 + $0x18] sm:$0xff]
    %v81 = vld [vmem:[#allocation5 + $0x20] sm:$0xff]
    %v82 = vld [vmem:[#allocation5 + $0x28] sm:$0xff]
    %v83 = vld [vmem:[#allocation5 + $0x30] sm:$0xff]
    %v84 = vld [vmem:[#allocation5 + $0x38] sm:$0xff]
    %v85 = vld [vmem:[#allocation5 + $0x40] sm:$0xff]
    %v86 = vld [vmem:[#allocation5 + $0x48] sm:$0xff]
    %v87 = vld [vmem:[%s2] sm:$0x1]
    %v89 = vlaneseq
    %v90 = vshrl.u32 %v89, 7
    %v91 = vsub.s32 0, %v90
    %v92 = vrot.slane %v87, %v91
    %vm94 = vcmask 654336
    %v96 = vsel %vm94, %v74, 0
    %v99 = vsel %vm94, %v75, 0
    %v102 = vsel %vm94, %v76, 0
    %104 = vmatprep.subr.mxu0 0.0
    %105 = vmatpush1.msra.mxu0 %v77
    %106 = vmatprep.subr.mxu0 0.0
    %107 = vmatpush1.msra.mxu0 %v78
    %108 = vmatprep.subr.mxu0 0.0
    %109 = vmatpush1.msra.mxu0 %v79
    %110 = vmatprep.subr.mxu0 0.0
    %111 = vmatpush1.msra.mxu0 %v80
    %112 = vmatprep.subr.mxu0 0.0
    %113 = vmatpush1.msra.mxu0 %v81
    %114 = vmatprep.subr.mxu0 0.0
    %115 = vmatpush1.msra.mxu0 %v82
    %116 = vmatprep.subr.mxu0 0.0
    %117 = vmatpush1.msra.mxu0 %v83
    %118 = vmatprep.subr.mxu0 0.0
    %119 = vmatpush1.msra.mxu0 %v84
    %120 = vmatprep.subr.mxu0 0.0
    %121 = vmatpush1.msra.mxu0 %v85
    %122 = vmatprep.subr.mxu0 0.0
    %123 = vmatpush1.msra.mxu0 %v86
    %124 = vmatprep.subr.mxu0 0.0
    %125 = vmatpush1.msra.mxu0 0.0
    %126 = vmatprep.subr.mxu0 0.0
    %127 = vmatpush1.msra.mxu0 0.0
    %128 = vmatprep.subr.mxu0 0.0
    %129 = vmatpush1.msra.mxu0 0.0
    %130 = vmatprep.subr.mxu0 0.0
    %131 = vmatpush1.msra.mxu0 0.0
    %132 = vmatprep.subr.mxu0 0.0
    %133 = vmatpush1.msra.mxu0 0.0
    %134 = vmatprep.subr.mxu0 0.0
    %135 = vmatpush1.msra.mxu0 0.0
    %136 = vmatprep.subr.mxu0 0.0
    %137 = vmatpush1.msra.mxu0 0.0
    %138 = vmatprep.subr.mxu0 0.0
    %139 = vmatpush1.msra.mxu0 0.0
    %140 = vmatprep.subr.mxu0 0.0
    %141 = vmatpush1.msra.mxu0 0.0
    %142 = vmatprep.subr.mxu0 0.0
    %143 = vmatpush1.msra.mxu0 0.0
    %144 = vmatprep.subr.mxu0 0.0
    %145 = vmatpush1.msra.mxu0 0.0
    %146 = vmatprep.subr.mxu0 0.0
    %147 = vmatpush1.msra.mxu0 0.0
    %148 = vmatprep.subr.mxu0 0.0
    %149 = vmatpush1.msra.mxu0 0.0
    %150 = vmatprep.subr.mxu0 0.0
    %151 = vmatpush1.msra.mxu0 0.0
    %152 = vmatprep.subr.mxu0 0.0
    %153 = vmatpush1.msra.mxu0 0.0
    %154 = vmatprep.subr.mxu0 0.0
    %155 = vmatpush1.msra.mxu0 0.0
    %156 = vmatprep.subr.mxu0 0.0
    %157 = vmatpush1.msra.mxu0 0.0
    %158 = vmatprep.subr.mxu0 0.0
    %159 = vmatpush1.msra.mxu0 0.0
    %160 = vmatprep.subr.mxu0 0.0
    %161 = vmatpush1.msra.mxu0 0.0
    %162 = vmatprep.subr.mxu0 0.0
    %163 = vmatpush1.msra.mxu0 0.0
    %164 = vmatprep.subr.mxu0 0.0
    %165 = vmatpush1.msra.mxu0 0.0
    %166 = vmatprep.subr.mxu0 0.0
    %167 = vmatpush1.msra.mxu0 0.0
    %168 = vmatprep.mubr.f32.mxu0 0.0
    %169 = vmatmul.mubr.f32.gmra.mrb[0].mxu0 %v96
    %v170 = vpop.f32.mrb[0].mxu0
    %v171 = vadd.f32 %v92, %v170
    %v172 = vpop.f32.mrb[0].mxu0
    %173 = vmatprep.mubr.f32.mxu0 0.0
    %174 = vmatmul.mubr.f32.gmra.mrb[0].mxu0 %v99
    %v175 = vpop.f32.mrb[0].mxu0
    %v176 = vadd.f32 %v92, %v175
    %v177 = vpop.f32.mrb[0].mxu0
    %178 = vmatprep.mubr.f32.mxu0 0.0
    %179 = vmatmul.mubr.f32.gmra.mrb[0].mxu0 %v102
    %v180 = vpop.f32.mrb[0].mxu0
    %v181 = vadd.f32 %v92, %v180
    %v182 = vpop.f32.mrb[0].mxu0
    %183 = vdwg.mxu0
    %v184 = vmax.f32 %v171, 0.0
    %v185 = vmax.f32 %v176, 0.0
    %v186 = vmax.f32 %v181, 0.0
    %v187 = vld [vmem:[%s3] sm:$0xff]
    %v188 = vld [vmem:[%s3 + $0x8] sm:$0xff]
    %v189 = vld [vmem:[%s3 + $0x10] sm:$0xff]
    %v190 = vld [vmem:[%s3 + $0x18] sm:$0xff]
    %v191 = vld [vmem:[%s3 + $0x20] sm:$0xff]
    %v192 = vld [vmem:[%s3 + $0x28] sm:$0xff]
    %v193 = vld [vmem:[%s3 + $0x30] sm:$0xff]
    %v194 = vld [vmem:[%s3 + $0x38] sm:$0xff]
    %v195 = vld [vmem:[%s3 + $0x40] sm:$0xff]
    %v196 = vld [vmem:[%s3 + $0x48] sm:$0xff]
    %v197 = vld [vmem:[%s3 + $0x50] sm:$0xff]
    %v198 = vld [vmem:[%s3 + $0x58] sm:$0xff]
    %v199 = vld [vmem:[%s3 + $0x60] sm:$0xff]
    %v200 = vld [vmem:[%s3 + $0x68] sm:$0xff]
    %v201 = vld [vmem:[%s3 + $0x70] sm:$0xff]
    %v202 = vld [vmem:[%s3 + $0x78] sm:$0xff]
    %v203 = vld [vmem:[%s4] sm:$0x1]
    %v205 = vlaneseq
    %v206 = vshrl.u32 %v205, 7
    %v207 = vsub.s32 0, %v206
    %v208 = vrot.slane %v203, %v207
    %210 = vmatprep.subr.mxu0 0.0
    %211 = vmatpush1.msra.mxu0 %v187
    %212 = vmatprep.subr.mxu0 0.0
    %213 = vmatpush1.msra.mxu0 %v188
    %214 = vmatprep.subr.mxu0 0.0
    %215 = vmatpush1.msra.mxu0 %v189
    %216 = vmatprep.subr.mxu0 0.0
    %217 = vmatpush1.msra.mxu0 %v190
    %218 = vmatprep.subr.mxu0 0.0
    %219 = vmatpush1.msra.mxu0 %v191
    %220 = vmatprep.subr.mxu0 0.0
    %221 = vmatpush1.msra.mxu0 %v192
    %222 = vmatprep.subr.mxu0 0.0
    %223 = vmatpush1.msra.mxu0 %v193
    %224 = vmatprep.subr.mxu0 0.0
    %225 = vmatpush1.msra.mxu0 %v194
    %226 = vmatprep.subr.mxu0 0.0
    %227 = vmatpush1.msra.mxu0 %v195
    %228 = vmatprep.subr.mxu0 0.0
    %229 = vmatpush1.msra.mxu0 %v196
    %230 = vmatprep.subr.mxu0 0.0
    %231 = vmatpush1.msra.mxu0 %v197
    %232 = vmatprep.subr.mxu0 0.0
    %233 = vmatpush1.msra.mxu0 %v198
    %234 = vmatprep.subr.mxu0 0.0
    %235 = vmatpush1.msra.mxu0 %v199
    %236 = vmatprep.subr.mxu0 0.0
    %237 = vmatpush1.msra.mxu0 %v200
    %238 = vmatprep.subr.mxu0 0.0
    %239 = vmatpush1.msra.mxu0 %v201
    %240 = vmatprep.subr.mxu0 0.0
    %241 = vmatpush1.msra.mxu0 %v202
    %242 = vmatprep.subr.mxu0 0.0
    %243 = vmatpush1.msra.mxu0 0.0
    %244 = vmatprep.subr.mxu0 0.0
    %245 = vmatpush1.msra.mxu0 0.0
    %246 = vmatprep.subr.mxu0 0.0
    %247 = vmatpush1.msra.mxu0 0.0
    %248 = vmatprep.subr.mxu0 0.0
    %249 = vmatpush1.msra.mxu0 0.0
    %250 = vmatprep.subr.mxu0 0.0
    %251 = vmatpush1.msra.mxu0 0.0
    %252 = vmatprep.subr.mxu0 0.0
    %253 = vmatpush1.msra.mxu0 0.0
    %254 = vmatprep.subr.mxu0 0.0
    %255 = vmatpush1.msra.mxu0 0.0
    %256 = vmatprep.subr.mxu0 0.0
    %257 = vmatpush1.msra.mxu0 0.0
    %258 = vmatprep.subr.mxu0 0.0
    %259 = vmatpush1.msra.mxu0 0.0
    %260 = vmatprep.subr.mxu0 0.0
    %261 = vmatpush1.msra.mxu0 0.0
    %262 = vmatprep.subr.mxu0 0.0
    %263 = vmatpush1.msra.mxu0 0.0
    %264 = vmatprep.subr.mxu0 0.0
    %265 = vmatpush1.msra.mxu0 0.0
    %266 = vmatprep.subr.mxu0 0.0
    %267 = vmatpush1.msra.mxu0 0.0
    %268 = vmatprep.subr.mxu0 0.0
    %269 = vmatpush1.msra.mxu0 0.0
    %270 = vmatprep.subr.mxu0 0.0
    %271 = vmatpush1.msra.mxu0 0.0
    %272 = vmatprep.subr.mxu0 0.0
    %273 = vmatpush1.msra.mxu0 0.0
    %274 = vmatprep.mubr.f32.mxu0 0.0
    %275 = vmatmul.mubr.f32.gmra.mrb[0].mxu0 %v184
    %v276 = vpop.f32.mrb[0].mxu0
    %v277 = vadd.f32 %v208, %v276
    %v278 = vpop.f32.mrb[0].mxu0
    %279 = vmatprep.mubr.f32.mxu0 0.0
    %280 = vmatmul.mubr.f32.gmra.mrb[0].mxu0 %v185
    %v281 = vpop.f32.mrb[0].mxu0
    %v282 = vadd.f32 %v208, %v281
    %v283 = vpop.f32.mrb[0].mxu0
    %284 = vmatprep.mubr.f32.mxu0 0.0
    %285 = vmatmul.mubr.f32.gmra.mrb[0].mxu0 %v186
    %v286 = vpop.f32.mrb[0].mxu0
    %v287 = vadd.f32 %v208, %v286
    %v288 = vpop.f32.mrb[0].mxu0
    %289 = vdwg.mxu0
    %v290 = vmax.f32 %v277, 0.0
    %v291 = vmax.f32 %v282, 0.0
    %v292 = vmax.f32 %v287, 0.0
    %v293 = vld [vmem:[#allocation7] sm:$0xff]
    %v294 = vld [vmem:[#allocation7 + $0x8] sm:$0xff]
    %v295 = vld [vmem:[#allocation7 + $0x10] sm:$0xff]
    %v296 = vld [vmem:[#allocation7 + $0x18] sm:$0xff]
    %v297 = vld [vmem:[#allocation7 + $0x20] sm:$0xff]
    %v298 = vld [vmem:[#allocation7 + $0x28] sm:$0xff]
    %v299 = vld [vmem:[#allocation7 + $0x30] sm:$0xff]
    %v300 = vld [vmem:[#allocation7 + $0x38] sm:$0xff]
    %v301 = vld [vmem:[#allocation7 + $0x40] sm:$0xff]
    %v302 = vld [vmem:[#allocation7 + $0x48] sm:$0xff]
    %v303 = vld [vmem:[#allocation7 + $0x50] sm:$0xff]
    %v304 = vld [vmem:[#allocation7 + $0x58] sm:$0xff]
    %v305 = vld [vmem:[#allocation7 + $0x60] sm:$0xff]
    %v306 = vld [vmem:[#allocation7 + $0x68] sm:$0xff]
    %v307 = vld [vmem:[#allocation7 + $0x70] sm:$0xff]
    %v308 = vld [vmem:[#allocation7 + $0x78] sm:$0xff]
    %v309 = vld [vmem:[%s6] sm:$0x1]
    %v311 = vlaneseq
    %v312 = vshrl.u32 %v311, 7
    %v313 = vsub.s32 0, %v312
    %v314 = vrot.slane %v309, %v313
    %316 = vmatprep.subr.mxu0 0.0
    %317 = vmatpush1.msra.mxu0 %v293
    %318 = vmatprep.subr.mxu0 0.0
    %319 = vmatpush1.msra.mxu0 %v294
    %320 = vmatprep.subr.mxu0 0.0
    %321 = vmatpush1.msra.mxu0 %v295
    %322 = vmatprep.subr.mxu0 0.0
    %323 = vmatpush1.msra.mxu0 %v296
    %324 = vmatprep.subr.mxu0 0.0
    %325 = vmatpush1.msra.mxu0 %v297
    %326 = vmatprep.subr.mxu0 0.0
    %327 = vmatpush1.msra.mxu0 %v298
    %328 = vmatprep.subr.mxu0 0.0
    %329 = vmatpush1.msra.mxu0 %v299
    %330 = vmatprep.subr.mxu0 0.0
    %331 = vmatpush1.msra.mxu0 %v300
    %332 = vmatprep.subr.mxu0 0.0
    %333 = vmatpush1.msra.mxu0 %v301
    %334 = vmatprep.subr.mxu0 0.0
    %335 = vmatpush1.msra.mxu0 %v302
    %336 = vmatprep.subr.mxu0 0.0
    %337 = vmatpush1.msra.mxu0 %v303
    %338 = vmatprep.subr.mxu0 0.0
    %339 = vmatpush1.msra.mxu0 %v304
    %340 = vmatprep.subr.mxu0 0.0
    %341 = vmatpush1.msra.mxu0 %v305
    %342 = vmatprep.subr.mxu0 0.0
    %343 = vmatpush1.msra.mxu0 %v306
    %344 = vmatprep.subr.mxu0 0.0
    %345 = vmatpush1.msra.mxu0 %v307
    %346 = vmatprep.subr.mxu0 0.0
    %347 = vmatpush1.msra.mxu0 %v308
    %348 = vmatprep.subr.mxu0 0.0
    %349 = vmatpush1.msra.mxu0 0.0
    %350 = vmatprep.subr.mxu0 0.0
    %351 = vmatpush1.msra.mxu0 0.0
    %352 = vmatprep.subr.mxu0 0.0
    %353 = vmatpush1.msra.mxu0 0.0
    %354 = vmatprep.subr.mxu0 0.0
    %355 = vmatpush1.msra.mxu0 0.0
    %356 = vmatprep.subr.mxu0 0.0
    %357 = vmatpush1.msra.mxu0 0.0
    %358 = vmatprep.subr.mxu0 0.0
    %359 = vmatpush1.msra.mxu0 0.0
    %360 = vmatprep.subr.mxu0 0.0
    %361 = vmatpush1.msra.mxu0 0.0
    %362 = vmatprep.subr.mxu0 0.0
    %363 = vmatpush1.msra.mxu0 0.0
    %364 = vmatprep.subr.mxu0 0.0
    %365 = vmatpush1.msra.mxu0 0.0
    %366 = vmatprep.subr.mxu0 0.0
    %367 = vmatpush1.msra.mxu0 0.0
    %368 = vmatprep.subr.mxu0 0.0
    %369 = vmatpush1.msra.mxu0 0.0
    %370 = vmatprep.subr.mxu0 0.0
    %371 = vmatpush1.msra.mxu0 0.0
    %372 = vmatprep.subr.mxu0 0.0
    %373 = vmatpush1.msra.mxu0 0.0
    %374 = vmatprep.subr.mxu0 0.0
    %375 = vmatpush1.msra.mxu0 0.0
    %376 = vmatprep.subr.mxu0 0.0
    %377 = vmatpush1.msra.mxu0 0.0
    %378 = vmatprep.subr.mxu0 0.0
    %379 = vmatpush1.msra.mxu0 0.0
    %380 = vmatprep.mubr.f32.mxu0 0.0
    %381 = vmatmul.mubr.f32.gmra.mrb[0].mxu0 %v290
    %v382 = vpop.f32.mrb[0].mxu0
    %v383 = vadd.f32 %v314, %v382
    %v384 = vpop.f32.mrb[0].mxu0
    %385 = vmatprep.mubr.f32.mxu0 0.0
    %386 = vmatmul.mubr.f32.gmra.mrb[0].mxu0 %v291
    %v387 = vpop.f32.mrb[0].mxu0
    %v388 = vadd.f32 %v314, %v387
    %v389 = vpop.f32.mrb[0].mxu0
    %390 = vmatprep.mubr.f32.mxu0 0.0
    %391 = vmatmul.mubr.f32.gmra.mrb[0].mxu0 %v292
    %v392 = vpop.f32.mrb[0].mxu0
    %v393 = vadd.f32 %v314, %v392
    %v394 = vpop.f32.mrb[0].mxu0
    %395 = vdwg.mxu0
    %v396 = vmax.f32 %v383, 0.0
    %v397 = vmax.f32 %v388, 0.0
    %v398 = vmax.f32 %v393, 0.0
    %v399 = vld [vmem:[%s7] sm:$0xff]
    %v400 = vld [vmem:[%s7 + $0x8] sm:$0xff]
    %v401 = vld [vmem:[%s7 + $0x10] sm:$0xff]
    %v402 = vld [vmem:[%s7 + $0x18] sm:$0xff]
    %v403 = vld [vmem:[%s7 + $0x20] sm:$0xff]
    %v404 = vld [vmem:[%s7 + $0x28] sm:$0xff]
    %v405 = vld [vmem:[%s7 + $0x30] sm:$0xff]
    %v406 = vld [vmem:[%s7 + $0x38] sm:$0xff]
    %v407 = vld [vmem:[%s7 + $0x40] sm:$0xff]
    %v408 = vld [vmem:[%s7 + $0x48] sm:$0xff]
    %v409 = vld [vmem:[%s7 + $0x50] sm:$0xff]
    %v410 = vld [vmem:[%s7 + $0x58] sm:$0xff]
    %v411 = vld [vmem:[%s7 + $0x60] sm:$0xff]
    %v412 = vld [vmem:[%s7 + $0x68] sm:$0xff]
    %v413 = vld [vmem:[%s7 + $0x70] sm:$0xff]
    %v414 = vld [vmem:[%s7 + $0x78] sm:$0xff]
    %s415 = sld [smem:[#allocation2]]
    %v416 = vstv %s415
    %417 = vmatprep.subr.mxu0 0.0
    %418 = vmatpush1.msra.mxu0 %v399
    %419 = vmatprep.subr.mxu0 0.0
    %420 = vmatpush1.msra.mxu0 %v400
    %421 = vmatprep.subr.mxu0 0.0
    %422 = vmatpush1.msra.mxu0 %v401
    %423 = vmatprep.subr.mxu0 0.0
    %424 = vmatpush1.msra.mxu0 %v402
    %425 = vmatprep.subr.mxu0 0.0
    %426 = vmatpush1.msra.mxu0 %v403
    %427 = vmatprep.subr.mxu0 0.0
    %428 = vmatpush1.msra.mxu0 %v404
    %429 = vmatprep.subr.mxu0 0.0
    %430 = vmatpush1.msra.mxu0 %v405
    %431 = vmatprep.subr.mxu0 0.0
    %432 = vmatpush1.msra.mxu0 %v406
    %433 = vmatprep.subr.mxu0 0.0
    %434 = vmatpush1.msra.mxu0 %v407
    %435 = vmatprep.subr.mxu0 0.0
    %436 = vmatpush1.msra.mxu0 %v408
    %437 = vmatprep.subr.mxu0 0.0
    %438 = vmatpush1.msra.mxu0 %v409
    %439 = vmatprep.subr.mxu0 0.0
    %440 = vmatpush1.msra.mxu0 %v410
    %441 = vmatprep.subr.mxu0 0.0
    %442 = vmatpush1.msra.mxu0 %v411
    %443 = vmatprep.subr.mxu0 0.0
    %444 = vmatpush1.msra.mxu0 %v412
    %445 = vmatprep.subr.mxu0 0.0
    %446 = vmatpush1.msra.mxu0 %v413
    %447 = vmatprep.subr.mxu0 0.0
    %448 = vmatpush1.msra.mxu0 %v414
    %449 = vmatprep.subr.mxu0 0.0
    %450 = vmatpush1.msra.mxu0 0.0
    %451 = vmatprep.subr.mxu0 0.0
    %452 = vmatpush1.msra.mxu0 0.0
    %453 = vmatprep.subr.mxu0 0.0
    %454 = vmatpush1.msra.mxu0 0.0
    %455 = vmatprep.subr.mxu0 0.0
    %456 = vmatpush1.msra.mxu0 0.0
    %457 = vmatprep.subr.mxu0 0.0
    %458 = vmatpush1.msra.mxu0 0.0
    %459 = vmatprep.subr.mxu0 0.0
    %460 = vmatpush1.msra.mxu0 0.0
    %461 = vmatprep.subr.mxu0 0.0
    %462 = vmatpush1.msra.mxu0 0.0
    %463 = vmatprep.subr.mxu0 0.0
    %464 = vmatpush1.msra.mxu0 0.0
    %465 = vmatprep.subr.mxu0 0.0
    %466 = vmatpush1.msra.mxu0 0.0
    %467 = vmatprep.subr.mxu0 0.0
    %468 = vmatpush1.msra.mxu0 0.0
    %469 = vmatprep.subr.mxu0 0.0
    %470 = vmatpush1.msra.mxu0 0.0
    %471 = vmatprep.subr.mxu0 0.0
    %472 = vmatpush1.msra.mxu0 0.0
    %473 = vmatprep.subr.mxu0 0.0
    %474 = vmatpush1.msra.mxu0 0.0
    %475 = vmatprep.subr.mxu0 0.0
    %476 = vmatpush1.msra.mxu0 0.0
    %477 = vmatprep.subr.mxu0 0.0
    %478 = vmatpush1.msra.mxu0 0.0
    %479 = vmatprep.subr.mxu0 0.0
    %480 = vmatpush1.msra.mxu0 0.0
    %481 = vmatprep.mubr.f32.mxu0 0.0
    %482 = vmatmul.mubr.f32.gmra.mrb[0].mxu0 %v396
    %v483 = vpop.f32.mrb[0].mxu0
    %v484 = vadd.f32 %v416, %v483
    %v485 = vpop.f32.mrb[0].mxu0
    %486 = vmatprep.mubr.f32.mxu0 0.0
    %487 = vmatmul.mubr.f32.gmra.mrb[0].mxu0 %v397
    %v488 = vpop.f32.mrb[0].mxu0
    %v489 = vadd.f32 %v416, %v488
    %v490 = vpop.f32.mrb[0].mxu0
    %491 = vmatprep.mubr.f32.mxu0 0.0
    %492 = vmatmul.mubr.f32.gmra.mrb[0].mxu0 %v398
    %v493 = vpop.f32.mrb[0].mxu0
    %v494 = vadd.f32 %v416, %v493
    %v495 = vpop.f32.mrb[0].mxu0
    %496 = vdwg.mxu0
    %vm497 = vcmask 31744
    %498 = vst.msk [vmem:[%s9] sm:$0xff] %vm497, %v484
    %499 = vst.msk [vmem:[%s9 + $0x8] sm:$0xff] %vm497, %v489
    %500 = vst.msk [vmem:[%s9 + $0x10] sm:$0xff] %vm497, %v494
    // Predicated region
    $region50: #{tpu_custom_call.1} parent=1 // pred_check
      _
    $region51: #{tpu_custom_call.1} parent=1 // pred_check_branch
      %502 = sbr.rel (0) target = $region53
    $region52: #{tpu_custom_call.1} parent=1 // pred_region
      _
    $region53: #{tpu_custom_call.1} parent=1 // pred_fallthru
      _
    // Predicated region
    $region54: #{tpu_custom_call.1} parent=1 // pred_check
      _
    $region55: #{tpu_custom_call.1} parent=1 // pred_check_branch
      %504 = sbr.rel (0) target = $region57
    $region56: #{tpu_custom_call.1} parent=1 // pred_region
      _
    $region57: #{tpu_custom_call.1} parent=1 // pred_fallthru
      _
    %505 = vsyncpa [#allocation4], 1
    %506 = vsyncpa [#allocation6], 1

</llo_original>
